<compile_context>
chip_gen: v7x
topology: tpu7x:2x2x1
jax: 0.10.0
libtpu: 0.0.40
codegen_flags: <defaults>
</compile_context>

<pallas_src>
import functools
import math

import jax
import jax.numpy as jnp
from jax.experimental import pallas as pl
from jax.experimental.pallas import tpu as pltpu


# ---------------------------------------------------------------------------
# Kernels
# ---------------------------------------------------------------------------

def _gsn_kernel_k1(scale_ref, x_ref, o_ref):
    # scale_ref: (tile, 1) f32 -- 1/sqrt(|V|) per node (one node per row)
    # x_ref/o_ref: (tile, width)
    # Multiply in f32, cast once (matches reference/PyG semantics for bf16 too).
    # NOTE: the trailing cdiv-partial block may contain OOB garbage rows; Pallas
    # masks those writes and nothing here reduces across rows, so it's safe.
    o_ref[...] = (x_ref[...].astype(jnp.float32) * scale_ref[...]).astype(o_ref.dtype)


def _gsn_kernel_fold(e_ref, scale_ref, x_ref, o_ref):
    # e_ref:     (k, width) f32 one-hot expansion matrix, E[j, l] = (l // F == j)
    # scale_ref: (tile, k)  f32 per-node scales of the k nodes folded per row
    # x_ref/o_ref: (tile, width = k*F)
    # Per-node -> per-lane expansion on the MXU (idle in this kernel) instead of
    # a k-deep VPU compare/select chain; keeps the kernel at the HBM roofline.
    s_exp = jnp.dot(scale_ref[...], e_ref[...], preferred_element_type=jnp.float32)
    o_ref[...] = (x_ref[...].astype(jnp.float32) * s_exp).astype(o_ref.dtype)


# ---------------------------------------------------------------------------
# Wrapper
# ---------------------------------------------------------------------------

def _round_up(v, m):
    return ((v + m - 1) // m) * m


_E_BYTES_CAP = 4 << 20      # per-buffer budget for the one-hot matrix E
_VMEM_BUDGET = 36 << 20     # target for the whole double-buffered working set
_VMEM_LIMIT = 48 << 20      # explicit scoped-VMEM limit (ok on v5e/v6e/v7x)
_TARGET_X_TILE = 4 << 20    # ~4 MiB of x per tile (v7x-friendly; harmless on v5e/v6e)


def graph_size_norm(x, batch=None, *, num_graphs=None, tile_rows=None):
    """GraphSizeNorm forward: x_i / sqrt(|V_{batch[i]}|)  (PyG semantics)."""
    n, f = x.shape

    # ---- O(N) glue on XLA: per-node scale = rsqrt(deg(batch))[batch], f32 ----
    if batch is None:
        scale = jnp.full((n,), float(n) ** -0.5, dtype=jnp.float32)
    else:
        batch = batch.astype(jnp.int32)
        # static segment bound keeps this jit-friendly (no int(jnp.max(batch)))
        num_segments = int(num_graphs) if num_graphs is not None else n
        deg = jax.ops.segment_sum(jnp.ones((n,), jnp.float32), batch,
                                  num_segments=num_segments)
        scale = jax.lax.rsqrt(deg)[batch]                       # (n,) f32
    # TODO(synk): fuse/shrink this scale pipeline for very narrow bf16 features,
    # where its N*4 B side-channel becomes a visible fraction of total traffic.

    # ---- lane-dense folding: pack k nodes per row so width = k*F is % 128 ----
    itemsize = jnp.dtype(x.dtype).itemsize
    k = 1
    if f % 128 != 0:
        cand = 128 // math.gcd(f, 128)          # smallest k with (k*F) % 128 == 0
        if cand * cand * f * 4 <= _E_BYTES_CAP:  # keep E (cand, cand*F) f32 small
            k = cand
    pad = (-n) % k
    n_pad = n + pad
    if pad:
        # TODO(synk): handle the ragged tail in-kernel to avoid this pad copy.
        x_in = jnp.pad(x, ((0, pad), (0, 0)))
        scale = jnp.pad(scale, (0, pad))
    else:
        x_in = x
    rows = n_pad // k
    width = k * f
    x_view = x_in.reshape(rows, width)          # row-major -> free reshape
    scale_view = scale.reshape(rows, k)

    e_bytes = k * width * 4 if k > 1 else 0

    # ---- tile sizing: ~4 MiB of x per tile, honest VMEM accounting ----------
    mult = 16 if itemsize < 4 else 8            # sublane granularity
    row_x_bytes = width * itemsize
    # (tile, k) f32 scale block is lane-padded to 128 lanes in VMEM
    row_db_bytes = 2 * (2 * row_x_bytes + 128 * 4)    # in + out + scale, 2-deep
    vmem_budget = _VMEM_BUDGET - 2 * e_bytes
    if tile_rows is None:
        if rows <= mult:
            tile_rows = rows                    # full extent (always legal)
        else:
            tr = _TARGET_X_TILE // max(row_x_bytes, 1)
            tr = min(tr, vmem_budget // max(row_db_bytes, 1))
            tr = max(mult, (tr // mult) * mult)
            # keep >= 4 grid steps (2 per TensorCore under megacore) when possible
            quarter = _round_up(pl.cdiv(rows, 4), mult)
            tile_rows = max(mult, min(tr, quarter))
            # prefer an even step count so both v7x TensorCores stay busy
            steps = pl.cdiv(rows, tile_rows)
            if steps > 1 and steps % 2 == 1:
                tile_rows = max(mult, _round_up(pl.cdiv(rows, steps + 1), mult))
    grid = (pl.cdiv(rows, tile_rows),)

    # ---- cost estimate (helps XLA schedule the glue around the custom call) --
    flops = rows * width + (2 * rows * width * k if k > 1 else 0)
    bytes_accessed = 2 * rows * width * itemsize + rows * k * 4 + e_bytes
    cost = pl.CostEstimate(flops=flops, transcendentals=0,
                           bytes_accessed=bytes_accessed)

    if k > 1:
        lane_node = jnp.arange(width, dtype=jnp.int32) // f
        e_mat = (lane_node[None, :] ==
                 jnp.arange(k, dtype=jnp.int32)[:, None]).astype(jnp.float32)
        kernel = _gsn_kernel_fold
        in_specs = [
            pl.BlockSpec((k, width), lambda i: (0, 0)),           # E, resident
            pl.BlockSpec((tile_rows, k), lambda i: (i, 0)),       # per-node scales
            pl.BlockSpec((tile_rows, width), lambda i: (i, 0)),   # x tile
        ]
        args = (e_mat, scale_view, x_view)
    else:
        kernel = _gsn_kernel_k1
        in_specs = [
            pl.BlockSpec((tile_rows, 1), lambda i: (i, 0)),       # per-node scales
            pl.BlockSpec((tile_rows, width), lambda i: (i, 0)),   # x tile
        ]
        args = (scale_view, x_view)

    out = pl.pallas_call(
        kernel,
        out_shape=jax.ShapeDtypeStruct((rows, width), x.dtype),
        grid_spec=pltpu.PrefetchScalarGridSpec(
            num_scalar_prefetch=0,
            grid=grid,
            in_specs=in_specs,
            out_specs=pl.BlockSpec((tile_rows, width), lambda i: (i, 0)),
        ),
        compiler_params=pltpu.CompilerParams(
            dimension_semantics=("parallel",),
            vmem_limit_bytes=_VMEM_LIMIT,
        ),
        cost_estimate=cost,
    )(*args)

    out = out.reshape(n_pad, f)
    if pad:
        out = out[:n]
    return out


# ---------------------------------------------------------------------------
# Pure-JAX reference (PyG semantics)
# ---------------------------------------------------------------------------

def graph_size_norm_ref(x, batch=None, num_graphs=None):
    n = x.shape[0]
    if batch is None:
        batch = jnp.zeros((n,), dtype=jnp.int32)
    ng = int(num_graphs) if num_graphs is not None else int(jnp.max(batch)) + 1
    deg = jnp.zeros((ng,), jnp.float32).at[batch].add(1.0)
    inv_sqrt = deg ** -0.5
    return (x.astype(jnp.float32) * inv_sqrt[batch][:, None]).astype(x.dtype)


if __name__ == "__main__":
    key = jax.random.PRNGKey(0)
    kx, kx2 = jax.random.split(key)

    # ---- main case: 128 nodes, 32 features, 4 graphs (fold k=4, width=128) ----
    N, F, G = 128, 32, 4
    x = jax.random.normal(kx, (N, F), dtype=jnp.float32)
    sizes = [16, 48, 32, 32]
    batch = jnp.concatenate(
        [jnp.full((s,), g, dtype=jnp.int32) for g, s in enumerate(sizes)])

    out = jax.block_until_ready(graph_size_norm(x, batch, num_graphs=G))
    ref = graph_size_norm_ref(x, batch, num_graphs=G)
    assert out.shape == ref.shape and out.dtype == ref.dtype
    assert jnp.allclose(out, ref, atol=1e-5, rtol=1e-5)

    # ---- single-graph (batch=None) path ----
    out1 = jax.block_until_ready(graph_size_norm(x, None))
    assert jnp.allclose(out1, graph_size_norm_ref(x, None), atol=1e-5, rtol=1e-5)

    # ---- jit compatibility (static num_graphs, no device sync in wrapper) ----
    out_j = jax.block_until_ready(
        jax.jit(functools.partial(graph_size_norm, num_graphs=G))(x, batch))
    assert jnp.allclose(out_j, ref, atol=1e-5, rtol=1e-5)

    # ---- ragged n (exercises the pad + trailing partial block path) ----
    N2 = 130
    x2 = jax.random.normal(kx2, (N2, F), dtype=jnp.float32)
    batch2 = jnp.concatenate([batch, jnp.full((2,), G - 1, dtype=jnp.int32)])
    out2 = jax.block_until_ready(graph_size_norm(x2, batch2, num_graphs=G))
    ref2 = graph_size_norm_ref(x2, batch2, num_graphs=G)
    assert out2.shape == ref2.shape
    assert jnp.allclose(out2, ref2, atol=1e-5, rtol=1e-5)

    # ---- narrow odd F (fold k=128 via MXU one-hot expansion) ----
    N3, F3 = 256, 7
    x3 = jax.random.normal(kx, (N3, F3), dtype=jnp.float32)
    batch3 = jnp.where(jnp.arange(N3) < 100, 0, 1).astype(jnp.int32)
    out3 = jax.block_until_ready(graph_size_norm(x3, batch3, num_graphs=2))
    ref3 = graph_size_norm_ref(x3, batch3, num_graphs=2)
    assert jnp.allclose(out3, ref3, atol=1e-5, rtol=1e-5)

    print("KERNEL_OK")
</pallas_src>

<mosaic_0001>
module attributes {stable_mosaic.version = 11 : i64} {
  func.func @_gsn_kernel_fold(%arg0: i32, %arg1: memref<4x128xf32, #tpu.memory_space<vmem>>, %arg2: memref<8x4xf32, #tpu.memory_space<vmem>>, %arg3: memref<8x128xf32, #tpu.memory_space<vmem>>, %arg4: memref<8x128xf32, #tpu.memory_space<vmem>>) attributes {dimension_semantics = [#tpu.dimension_semantics<parallel>], iteration_bounds = array<i64: 4>, scalar_prefetch = 0 : i64, scratch_operands = 0 : i64, tpu.core_type = #tpu.core_type<tc>, window_params = [{pipeline_mode = #tpu.pipeline_mode<synchronous>, transform_indices = @transform_0, window_bounds = array<i64: 4, 128>}, {transform_indices = @transform_1, window_bounds = array<i64: 8, 4>}, {transform_indices = @transform_2, window_bounds = array<i64: 8, 128>}, {transform_indices = @transform_3, window_bounds = array<i64: 8, 128>}]} {
    %c0 = arith.constant 0 : index
    %c0_0 = arith.constant 0 : index
    %0 = vector.load %arg2[%c0, %c0_0] : memref<8x4xf32, #tpu.memory_space<vmem>>, vector<8x4xf32>
    %c0_1 = arith.constant 0 : index
    %c0_2 = arith.constant 0 : index
    %1 = vector.load %arg1[%c0_1, %c0_2] : memref<4x128xf32, #tpu.memory_space<vmem>>, vector<4x128xf32>
    %cst = arith.constant dense<0.000000e+00> : vector<8x128xf32>
    %2 = tpu.matmul %0, %1, %cst {dimension_numbers = #tpu.dot_dimension_numbers<[1], [0], [0], [1], [0, 0, 1, 1], [], []>} : vector<8x4xf32>, vector<4x128xf32>, vector<8x128xf32> -> vector<8x128xf32>
    %c0_3 = arith.constant 0 : index
    %c0_4 = arith.constant 0 : index
    %3 = vector.load %arg3[%c0_3, %c0_4] : memref<8x128xf32, #tpu.memory_space<vmem>>, vector<8x128xf32>
    %4 = arith.mulf %3, %2 : vector<8x128xf32>
    %c0_5 = arith.constant 0 : index
    %c0_6 = arith.constant 0 : index
    %5 = vector.load %arg4[%c0_5, %c0_6] : memref<8x128xf32, #tpu.memory_space<vmem>>, vector<8x128xf32>
    tpu.vector_store %arg4[%c0_5, %c0_6], %4 {strides = array<i32>} : memref<8x128xf32, #tpu.memory_space<vmem>>, vector<8x128xf32>,
    return
  }
  func.func @transform_0(%arg0: i32) -> (i32, i32) {
    %c0_i32 = arith.constant 0 : i32
    %c0_i32_0 = arith.constant 0 : i32
    %c0_i32_1 = arith.constant 0 : i32
    return %c0_i32, %c0_i32_0 : i32, i32
  }
  func.func @transform_1(%arg0: i32) -> (i32, i32) {
    %c0_i32 = arith.constant 0 : i32
    %c0_i32_0 = arith.constant 0 : i32
    return %arg0, %c0_i32 : i32, i32
  }
  func.func @transform_2(%arg0: i32) -> (i32, i32) {
    %c0_i32 = arith.constant 0 : i32
    %c0_i32_0 = arith.constant 0 : i32
    return %arg0, %c0_i32 : i32, i32
  }
  func.func @transform_3(%arg0: i32) -> (i32, i32) {
    %c0_i32 = arith.constant 0 : i32
    %c0_i32_0 = arith.constant 0 : i32
    return %arg0, %c0_i32 : i32, i32
  }
}

</mosaic_0001>

<llo_original>
// kernel: tpu_custom_call.1
$region0: #{tpu_custom_call.1}
  #allocation0 [shape = 'u32[]', space=smem, size = 0x4, offset = 0x4, fixed_abs, tag = 'smem constant byte address 0x4 - core index']
  #allocation1 [shape = 'u32[144,128]{1,0:T(1,128)}', space=vmem, size = 0x12000, scoped, tag = 'internal scratch']
  %s0 = inlined_call_operand.vmem [shape: f32[4,128], index: 0, kind: input, shape index: {}]
  %s1 = inlined_call_operand.vmem [shape: f32[32,4], index: 1, kind: input, shape index: {}]
  %s2 = inlined_call_operand.vmem [shape: f32[32,128], index: 2, kind: input, shape index: {}]
  %s3 = inlined_call_operand.hbm [shape: f32[32,128], index: 3, kind: output, shape index: {}]
  %s4 = sld [smem:[#allocation0]]
  $region45: #{tpu_custom_call.1} parent=0
    _
  %s6 = ssub.s32 1, %s4
  %s7 = scalar_select 0, %s6, %s4
  $region1: #{tpu_custom_call.1} parent=0
    #allocation2 [shape = 'u8[8192]{0}', space=vmem, size = 0x2000, scoped, tag = 'output window, operand 0']
    #allocation3 [shape = 's32[2]{0}', space=sflag, size = 0x8, scoped, tag = 'scoped memory for tpu_custom_call.1']
    %8 = vsyncpa [#allocation3], 0
    %s9 = scalar_lea.sflag [#allocation3], 1
    %10 = vsyncpa %s9, 0
    loop: start=0, step=1, limit=6
    $region2: #{tpu_custom_call.1} parent=1 // loop_pre_header
      _
    $region3: #{tpu_custom_call.1} parent=1 // loop_header
      %s12 = sphi 0, %s16
      %p13 = scmp.ge.s32.totalorder %s12, 6
      %s20 = sphi 0, %s20
      %s22 = sphi 0, %s20
      %s23 = sphi 0, %s22
      %s37 = sphi 0, %s23
      %s43 = sphi 0, %s45
      %s46 = sphi 0, %s43
      %s47 = sphi 0, %s46
      %s63 = sphi 0, %s47
      %s69 = sphi 0, %s71
      %s72 = sphi 0, %s69
      %s73 = sphi 0, %s72
      %s89 = sphi 0, %s73
      %s95 = sphi 0, %s97
      %s98 = sphi 0, %s95
      %s99 = sphi 0, %s98
      %s115 = sphi 0, %s99
    $region4: #{tpu_custom_call.1} parent=1 // loop_header_branch
      %15 = sbr.rel (%p13) target = $region8
    $region5: #{tpu_custom_call.1} parent=1 // loop_body
      %s17 = ssub.s32 %s12, 1
      %s18 = ssub.s32 %s12, 2
      %s19 = sadd.s32 %s12, 1
      %s21 = sadd.s32 %s20, 1
      %p24 = scmp.eq.s32.totalorder %s12, 3
      %p25 = scmp.ne.s32.totalorder %s20, %s22
      %p26 = scmp.eq.s32.totalorder %s12, 0
      %p27 = por %p25, %p26
      %p28 = scmp.ne.s32.totalorder %s20, %s22
      %p29 = scmp.eq.s32.totalorder %s17, 3
      %p30 = por %p28, %p29
      %p31 = scmp.ne.s32.totalorder %s22, %s23
      %p32 = scmp.eq.s32.totalorder %s17, 0
      %p33 = por %p31, %p32
      %p34 = scmp.ne.s32.totalorder %s22, %s23
      %p35 = scmp.eq.s32.totalorder %s18, 3
      %p36 = por %p34, %p35
      %p38 = scmp.ne.s32.totalorder %s23, %s37
      %p39 = scmp.eq.s32.totalorder %s18, 0
      %p40 = por %p38, %p39
      %s41 = ssub.s32 %s12, %s19
      %p42 = scmp.eq.s32.totalorder %s41, 0
      %s44 = sadd.s32 %s43, 1
      %s45 = scalar_select %p42, %s43, %s44
      %p48 = pneg %p42
      %p49 = scmp.eq.s32.totalorder %s12, 3
      %p50 = por %p48, %p49
      %p51 = scmp.ne.s32.totalorder %s43, %s46
      %p52 = scmp.eq.s32.totalorder %s12, 0
      %p53 = por %p51, %p52
      %p54 = scmp.ne.s32.totalorder %s43, %s46
      %p55 = scmp.eq.s32.totalorder %s17, 3
      %p56 = por %p54, %p55
      %p57 = scmp.ne.s32.totalorder %s46, %s47
      %p58 = scmp.eq.s32.totalorder %s17, 0
      %p59 = por %p57, %p58
      %p60 = scmp.ne.s32.totalorder %s46, %s47
      %p61 = scmp.eq.s32.totalorder %s18, 3
      %p62 = por %p60, %p61
      %p64 = scmp.ne.s32.totalorder %s47, %s63
      %p65 = scmp.eq.s32.totalorder %s18, 0
      %p66 = por %p64, %p65
      %s67 = ssub.s32 %s12, %s19
      %p68 = scmp.eq.s32.totalorder %s67, 0
      %s70 = sadd.s32 %s69, 1
      %s71 = scalar_select %p68, %s69, %s70
      %p74 = pneg %p68
      %p75 = scmp.eq.s32.totalorder %s12, 3
      %p76 = por %p74, %p75
      %p77 = scmp.ne.s32.totalorder %s69, %s72
      %p78 = scmp.eq.s32.totalorder %s12, 0
      %p79 = por %p77, %p78
      %p80 = scmp.ne.s32.totalorder %s69, %s72
      %p81 = scmp.eq.s32.totalorder %s17, 3
      %p82 = por %p80, %p81
      %p83 = scmp.ne.s32.totalorder %s72, %s73
      %p84 = scmp.eq.s32.totalorder %s17, 0
      %p85 = por %p83, %p84
      %p86 = scmp.ne.s32.totalorder %s72, %s73
      %p87 = scmp.eq.s32.totalorder %s18, 3
      %p88 = por %p86, %p87
      %p90 = scmp.ne.s32.totalorder %s73, %s89
      %p91 = scmp.eq.s32.totalorder %s18, 0
      %p92 = por %p90, %p91
      %s93 = ssub.s32 %s12, %s19
      %p94 = scmp.eq.s32.totalorder %s93, 0
      %s96 = sadd.s32 %s95, 1
      %s97 = scalar_select %p94, %s95, %s96
      %p100 = pneg %p94
      %p101 = scmp.eq.s32.totalorder %s12, 3
      %p102 = por %p100, %p101
      %p103 = scmp.ne.s32.totalorder %s95, %s98
      %p104 = scmp.eq.s32.totalorder %s12, 0
      %p105 = por %p103, %p104
      %p106 = scmp.ne.s32.totalorder %s95, %s98
      %p107 = scmp.eq.s32.totalorder %s17, 3
      %p108 = por %p106, %p107
      %p109 = scmp.ne.s32.totalorder %s98, %s99
      %p110 = scmp.eq.s32.totalorder %s17, 0
      %p111 = por %p109, %p110
      %p112 = scmp.ne.s32.totalorder %s98, %s99
      %p113 = scmp.eq.s32.totalorder %s18, 3
      %p114 = por %p112, %p113
      %p116 = scmp.ne.s32.totalorder %s99, %s115
      %p117 = scmp.eq.s32.totalorder %s18, 0
      %p118 = por %p116, %p117
      %p119 = scmp.le.s32.totalorder 1, %s12
      %p120 = scmp.lt.s32.totalorder %s12, 5
      %p121 = pnand %p119, %p120
      %p122 = pneg %p121
      // Predicated region
      $region9: #{tpu_custom_call.1} parent=5 // pred_check
        _
      $region10: #{tpu_custom_call.1} parent=5 // pred_check_branch
        %124 = sbr.rel (%p121) target = $region12
      $region11: #{tpu_custom_call.1} parent=5 // pred_region
        %s125 = ssub.s32 %s12, 1
        // Predicated region
        $region13: #{tpu_custom_call.1} parent=11 // pred_check
          %p126 = pneg %p33
        $region14: #{tpu_custom_call.1} parent=11 // pred_check_branch
          %128 = sbr.rel (%p126) target = $region16
        $region15: #{tpu_custom_call.1} parent=11 // pred_region
          _
        $region16: #{tpu_custom_call.1} parent=11 // pred_fallthru
          _
      $region12: #{tpu_custom_call.1} parent=5 // pred_fallthru
        _
      %p129 = scmp.lt.s32.totalorder %s12, 4
      // Predicated region
      $region17: #{tpu_custom_call.1} parent=5 // pred_check
        %p130 = pneg %p129
      $region18: #{tpu_custom_call.1} parent=5 // pred_check_branch
        %132 = sbr.rel (%p130) target = $region20
      $region19: #{tpu_custom_call.1} parent=5 // pred_region
        // Predicated region
        $region21: #{tpu_custom_call.1} parent=19 // pred_check
          %p133 = pneg %p53
        $region22: #{tpu_custom_call.1} parent=19 // pred_check_branch
          %135 = sbr.rel (%p133) target = $region24
        $region23: #{tpu_custom_call.1} parent=19 // pred_region
          %p136 = scmp.lt.s32.totalorder %s12, 3
          %s137 = scalar_select %p136, %s12, 3
          %s138 = smul.addr %s137, 8
          %s139 = scalar_lea.vmem %s1, %s138
        $region24: #{tpu_custom_call.1} parent=19 // pred_fallthru
          _
        // Predicated region
        $region25: #{tpu_custom_call.1} parent=19 // pred_check
          %p140 = pneg %p79
        $region26: #{tpu_custom_call.1} parent=19 // pred_check_branch
          %142 = sbr.rel (%p140) target = $region28
        $region27: #{tpu_custom_call.1} parent=19 // pred_region
          %p143 = scmp.lt.s32.totalorder %s12, 3
          %s144 = scalar_select %p143, %s12, 3
          %s145 = smul.addr %s144, 8
          %s146 = scalar_lea.vmem %s2, %s145
        $region28: #{tpu_custom_call.1} parent=19 // pred_fallthru
          _
      $region20: #{tpu_custom_call.1} parent=5 // pred_fallthru
        _
      %p147 = scmp.le.s32.totalorder 1, %s12
      %p148 = scmp.lt.s32.totalorder %s12, 5
      %p149 = pnand %p147, %p148
      %p150 = pneg %p149
      // Predicated region
      $region29: #{tpu_custom_call.1} parent=5 // pred_check
        _
      $region30: #{tpu_custom_call.1} parent=5 // pred_check_branch
        %152 = sbr.rel (%p149) target = $region32
      $region31: #{tpu_custom_call.1} parent=5 // pred_region
        %s153 = ssub.s32 %s12, 1
        %p154 = pneg %p33
        %p155 = pneg %p30
        %p156 = scmp.lt.s32.totalorder %s17, 3
        %s157 = scalar_select %p156, %s17, 3
        %s158 = smul.addr %s157, 8
        %s159 = scalar_lea.vmem %s1, %s158
        %p160 = pneg %p59
        %p161 = pneg %p56
        %p162 = scmp.lt.s32.totalorder %s17, 3
        %s163 = scalar_select %p162, %s17, 3
        %s164 = smul.addr %s163, 8
        %s165 = scalar_lea.vmem %s2, %s164
        %p166 = pneg %p85
        %p167 = pneg %p82
        %p168 = pneg %p111
        %p169 = pneg %p108
        %s170 = sand.u32 %s98, 1
        %s171 = scalar_lea.sflag [#allocation3], %s170
        %s172 = sand.u32 %s98, 1
        %s173 = smul.addr %s172, 8
        %s174 = scalar_lea.vmem [#allocation2], %s173
        %p175 = scmp.lt.s32.totalorder %s17, 3
        %s176 = scalar_select %p175, %s17, 3
        %s177 = smul.addr %s176, 8
        %s178 = scalar_lea.vmem %s1, %s177
        %p179 = scmp.lt.s32.totalorder %s17, 3
        %s180 = scalar_select %p179, %s17, 3
        %s181 = smul.addr %s180, 8
        %s182 = scalar_lea.vmem %s2, %s181
        %v183 = vld [vmem:[%s178] sm:$0xff]
        %v184 = vld [vmem:[%s0] sm:$0xf]
        %vm185 = vcmask 31744
        %v187 = vsel %vm185, %v183, 0
        %vm189 = vcmask 1043456
        %v191 = vsel %vm189, %v184, 0
        %193 = vmatprep.subr.mxu0 0.0
        %194 = vmatpush1.msra.mxu0 %v191
        %195 = vmatprep.subr.mxu0 0.0
        %196 = vmatpush1.msra.mxu0 0.0
        %197 = vmatprep.subr.mxu0 0.0
        %198 = vmatpush1.msra.mxu0 0.0
        %199 = vmatprep.subr.mxu0 0.0
        %200 = vmatpush1.msra.mxu0 0.0
        %201 = vmatprep.subr.mxu0 0.0
        %202 = vmatpush1.msra.mxu0 0.0
        %203 = vmatprep.subr.mxu0 0.0
        %204 = vmatpush1.msra.mxu0 0.0
        %205 = vmatprep.subr.mxu0 0.0
        %206 = vmatpush1.msra.mxu0 0.0
        %207 = vmatprep.subr.mxu0 0.0
        %208 = vmatpush1.msra.mxu0 0.0
        %209 = vmatprep.subr.mxu0 0.0
        %210 = vmatpush1.msra.mxu0 0.0
        %211 = vmatprep.subr.mxu0 0.0
        %212 = vmatpush1.msra.mxu0 0.0
        %213 = vmatprep.subr.mxu0 0.0
        %214 = vmatpush1.msra.mxu0 0.0
        %215 = vmatprep.subr.mxu0 0.0
        %216 = vmatpush1.msra.mxu0 0.0
        %217 = vmatprep.subr.mxu0 0.0
        %218 = vmatpush1.msra.mxu0 0.0
        %219 = vmatprep.subr.mxu0 0.0
        %220 = vmatpush1.msra.mxu0 0.0
        %221 = vmatprep.subr.mxu0 0.0
        %222 = vmatpush1.msra.mxu0 0.0
        %223 = vmatprep.subr.mxu0 0.0
        %224 = vmatpush1.msra.mxu0 0.0
        %225 = vmatprep.subr.mxu0 0.0
        %226 = vmatpush1.msra.mxu0 0.0
        %227 = vmatprep.subr.mxu0 0.0
        %228 = vmatpush1.msra.mxu0 0.0
        %229 = vmatprep.subr.mxu0 0.0
        %230 = vmatpush1.msra.mxu0 0.0
        %231 = vmatprep.subr.mxu0 0.0
        %232 = vmatpush1.msra.mxu0 0.0
        %233 = vmatprep.subr.mxu0 0.0
        %234 = vmatpush1.msra.mxu0 0.0
        %235 = vmatprep.subr.mxu0 0.0
        %236 = vmatpush1.msra.mxu0 0.0
        %237 = vmatprep.subr.mxu0 0.0
        %238 = vmatpush1.msra.mxu0 0.0
        %239 = vmatprep.subr.mxu0 0.0
        %240 = vmatpush1.msra.mxu0 0.0
        %241 = vmatprep.subr.mxu0 0.0
        %242 = vmatpush1.msra.mxu0 0.0
        %243 = vmatprep.subr.mxu0 0.0
        %244 = vmatpush1.msra.mxu0 0.0
        %245 = vmatprep.subr.mxu0 0.0
        %246 = vmatpush1.msra.mxu0 0.0
        %247 = vmatprep.subr.mxu0 0.0
        %248 = vmatpush1.msra.mxu0 0.0
        %249 = vmatprep.subr.mxu0 0.0
        %250 = vmatpush1.msra.mxu0 0.0
        %251 = vmatprep.subr.mxu0 0.0
        %252 = vmatpush1.msra.mxu0 0.0
        %253 = vmatprep.subr.mxu0 0.0
        %254 = vmatpush1.msra.mxu0 0.0
        %255 = vmatprep.subr.mxu0 0.0
        %256 = vmatpush1.msra.mxu0 0.0
        %257 = vmatprep.mubr.f32.mxu0 0.0
        %258 = vmatmul.mubr.f32.gmra.mrb[0].mxu0 %v187
        %v259 = vpop.f32.mrb[0].mxu0
        %v260 = vadd.f32 0.0, %v259
        %v261 = vpop.f32.mrb[0].mxu0
        %262 = vdwg.mxu0
        %v263 = vld [vmem:[%s182] sm:$0xff]
        %v264 = vmul.f32 %v263, %v260
        %265 = vst [vmem:[%s174] sm:$0xff] %v264
        %s266 = sand.u32 %s98, 1
        %s267 = scalar_lea.sflag [#allocation3], %s266
        %s268 = sand.u32 %s98, 1
        %s269 = smul.addr %s268, 8
        %s270 = scalar_lea.vmem [#allocation2], %s269
        // Predicated region
        $region33: #{tpu_custom_call.1} parent=31 // pred_check
          %p271 = pneg %p108
        $region34: #{tpu_custom_call.1} parent=31 // pred_check_branch
          %273 = sbr.rel (%p271) target = $region36
        $region35: #{tpu_custom_call.1} parent=31 // pred_region
          %s275 = ssub.s32 128, 128
          %276 = vsyncadd %s267, %s275
          %s277 = smul.addr %s17, 128
          %s278 = scalar_lea.hbm %s3, %s277
          %s280 = sshll.u32 %s270, 4
          %s281 = int_to_ptr.vmem [resolvable:$true] %s280
          %283 = dma.vmem_to_hbm [thread:$0]  %s281, 128, %s278, %s267
        $region36: #{tpu_custom_call.1} parent=31 // pred_fallthru
          _
      $region32: #{tpu_custom_call.1} parent=5 // pred_fallthru
        _
      %p284 = scmp.le.s32.totalorder 2, %s12
      // Predicated region
      $region37: #{tpu_custom_call.1} parent=5 // pred_check
        %p285 = pneg %p284
      $region38: #{tpu_custom_call.1} parent=5 // pred_check_branch
        %287 = sbr.rel (%p285) target = $region40
      $region39: #{tpu_custom_call.1} parent=5 // pred_region
        %s288 = ssub.s32 %s12, 2
        // Predicated region
        $region41: #{tpu_custom_call.1} parent=39 // pred_check
          %p289 = pneg %p114
        $region42: #{tpu_custom_call.1} parent=39 // pred_check_branch
          %291 = sbr.rel (%p289) target = $region44
        $region43: #{tpu_custom_call.1} parent=39 // pred_region
          %s292 = sand.u32 %s99, 1
          %s293 = scalar_lea.sflag [#allocation3], %s292
          %s294 = sand.u32 %s99, 1
          %s295 = smul.addr %s294, 8
          %s296 = scalar_lea.vmem [#allocation2], %s295
          %297 = dma.done %s293, 128
        $region44: #{tpu_custom_call.1} parent=39 // pred_fallthru
          _
      $region40: #{tpu_custom_call.1} parent=5 // pred_fallthru
        _
    $region6: #{tpu_custom_call.1} parent=1 // loop_footer
      %s16 = sadd.s32 1, %s12
    $region7: #{tpu_custom_call.1} parent=1 // loop_footer_branch
      %11 = sbr.rel target = $region3
    $region8: #{tpu_custom_call.1} parent=1 // loop_exit
      _
    %298 = vsyncpa [#allocation3], 1
    %s299 = scalar_lea.sflag [#allocation3], 1
    %300 = vsyncpa %s299, 1

</llo_original>
